<compile_context>
chip_gen: v7x
topology: tpu7x:2x2x1
jax: 0.10.0
libtpu: 0.0.40
codegen_flags: <defaults>
</compile_context>

<pallas_src>
import functools

import jax
import jax.numpy as jnp
from jax.experimental import pallas as pl
from jax.experimental.pallas import tpu as pltpu


def _round_up(x, m):
    return ((x + m - 1) // m) * m


def _fused_mlp_kernel(x_ref, w0_ref, b0_ref, wm_ref, bm_ref, wl_ref, bl_ref,
                      o_ref, *, num_mid):
    # x_ref : (TB, IN_P)          w0_ref: (IN_P, HID_P)   b0_ref: (1, HID_P)
    # wm_ref: (Lm, HID_P, HID_P)  bm_ref: (Lm, 1, HID_P)
    # wl_ref: (HID_P, OUT_P)      bl_ref: (1, OUT_P)      o_ref : (TB, OUT_P)
    h = jnp.dot(x_ref[...], w0_ref[...], preferred_element_type=jnp.float32)
    h = h + b0_ref[...]
    # Middle residual + ReLU layers; num_mid is a static Python int -> unrolled.
    for l in range(num_mid):
        z = jnp.dot(h, wm_ref[l], preferred_element_type=jnp.float32)
        z = z + bm_ref[l] + h          # layer(x) + x
        h = jnp.maximum(z, 0.0)        # ReLU; dropout == identity (eval mode)
    out = jnp.dot(h, wl_ref[...], preferred_element_type=jnp.float32)
    out = out + bl_ref[...]
    o_ref[...] = out.astype(o_ref.dtype)


def init_mlps_params(key, in_dim, hidden_dim, out_dim, layer_num, dtype=jnp.float32):
    """Deterministic params mirroring nn.Linear shapes: W (out, in), b (out,)."""
    dims = [(in_dim, hidden_dim)] + [(hidden_dim, hidden_dim)] * layer_num + [(hidden_dim, out_dim)]
    params = []
    for fan_in, fan_out in dims:
        key, kw, kb = jax.random.split(key, 3)
        bound = 1.0 / (float(fan_in) ** 0.5)
        w = jax.random.uniform(kw, (fan_out, fan_in), dtype=dtype, minval=-bound, maxval=bound)
        b = jax.random.uniform(kb, (fan_out,), dtype=dtype, minval=-bound, maxval=bound)
        params.append((w, b))
    return params


def make_mlps_forward(params, in_dim, hidden_dim, out_dim, dtype=jnp.float32):
    """One-time param prep (transpose + lane padding + stacking) and a jitted fused forward."""
    num_mid = len(params) - 2
    IN_P = _round_up(in_dim, 128)
    HID_P = _round_up(hidden_dim, 128)
    OUT_P = _round_up(out_dim, 128)

    def pad2(a, rows, cols):
        return jnp.pad(a, ((0, rows - a.shape[0]), (0, cols - a.shape[1])))

    # First layer: W (hidden, in) -> W^T padded to (IN_P, HID_P).
    w0, b0 = params[0]
    w0_p = pad2(jnp.asarray(w0, dtype).T, IN_P, HID_P)
    b0_p = jnp.pad(jnp.asarray(b0, dtype), (0, HID_P - hidden_dim)).reshape(1, HID_P)

    # Last layer: W (out, hidden) -> W^T padded to (HID_P, OUT_P).
    wl, bl = params[-1]
    wl_p = pad2(jnp.asarray(wl, dtype).T, HID_P, OUT_P)
    bl_p = jnp.pad(jnp.asarray(bl, dtype), (0, OUT_P - out_dim)).reshape(1, OUT_P)

    # Middle layers stacked: (Lm, HID_P, HID_P) / (Lm, 1, HID_P).
    if num_mid > 0:
        wm_p = jnp.stack([pad2(jnp.asarray(w, dtype).T, HID_P, HID_P)
                          for (w, _) in params[1:-1]])
        bm_p = jnp.stack([jnp.pad(jnp.asarray(b, dtype),
                                  (0, HID_P - hidden_dim)).reshape(1, HID_P)
                          for (_, b) in params[1:-1]])
    else:
        wm_p = jnp.zeros((1, HID_P, HID_P), dtype)
        bm_p = jnp.zeros((1, 1, HID_P), dtype)
    Lm = wm_p.shape[0]

    kernel = functools.partial(_fused_mlp_kernel, num_mid=num_mid)

    @jax.jit
    def forward(x):
        B = x.shape[0]
        # Batch tile: sublane-aligned (8 for f32), capped so larger batches become a
        # parallel grid over both TensorCores on v7x.
        TB = min(_round_up(B, 8), 128)
        B_P = _round_up(B, TB)
        x_p = jnp.pad(x.astype(dtype), ((0, B_P - B), (0, IN_P - in_dim)))

        grid = (B_P // TB,)
        flops = 2 * B_P * (IN_P * HID_P + num_mid * HID_P * HID_P + HID_P * OUT_P)
        bytes_accessed = 4 * (B_P * IN_P + B_P * OUT_P + IN_P * HID_P
                              + Lm * HID_P * HID_P + HID_P * OUT_P
                              + (2 + Lm) * HID_P + OUT_P)

        out_p = pl.pallas_call(
            kernel,
            out_shape=jax.ShapeDtypeStruct((B_P, OUT_P), dtype),
            grid=grid,
            in_specs=[
                pl.BlockSpec((TB, IN_P), lambda i: (i, 0)),          # activations: tiled over batch
                pl.BlockSpec((IN_P, HID_P), lambda i: (0, 0)),       # weights: resident (constant block)
                pl.BlockSpec((1, HID_P), lambda i: (0, 0)),
                pl.BlockSpec((Lm, HID_P, HID_P), lambda i: (0, 0, 0)),
                pl.BlockSpec((Lm, 1, HID_P), lambda i: (0, 0, 0)),
                pl.BlockSpec((HID_P, OUT_P), lambda i: (0, 0)),
                pl.BlockSpec((1, OUT_P), lambda i: (0, 0)),
            ],
            out_specs=pl.BlockSpec((TB, OUT_P), lambda i: (i, 0)),   # lane-dense (128-multiple) stores
            compiler_params=pltpu.CompilerParams(
                dimension_semantics=("parallel",)),
            cost_estimate=pl.CostEstimate(
                flops=flops, transcendentals=0, bytes_accessed=bytes_accessed),
        )(x_p, w0_p, b0_p, wm_p, bm_p, wl_p, bl_p)

        return out_p[:B, :out_dim]

    return forward


def mlps_reference(x, params):
    """Plain-JAX reference matching the PyTorch MLPs forward (eval mode)."""
    n = len(params)
    for i, (w, b) in enumerate(params):
        if i != 0 and i != n - 1:
            x = jnp.maximum(x @ w.T + b + x, 0.0)
        else:
            x = x @ w.T + b
    return x


if __name__ == "__main__":
    in_dim, hidden_dim, out_dim, layer_num = 16, 32, 8, 2
    batch = 4

    key = jax.random.PRNGKey(0)
    key, kx = jax.random.split(key)
    x = jax.random.normal(kx, (batch, in_dim), dtype=jnp.float32)

    params = init_mlps_params(key, in_dim, hidden_dim, out_dim, layer_num)
    forward = make_mlps_forward(params, in_dim, hidden_dim, out_dim)

    out = jax.block_until_ready(forward(x))

    ref = mlps_reference(x, params)
    assert out.shape == (batch, out_dim)
    assert jnp.allclose(out, ref, atol=1e-5, rtol=1e-5)

    print("KERNEL_OK")
</pallas_src>

<mosaic_0001>
module attributes {stable_mosaic.version = 11 : i64} {
  func.func @_fused_mlp_kernel(%arg0: i32, %arg1: memref<8x128xf32, #tpu.memory_space<vmem>>, %arg2: memref<128x128xf32, #tpu.memory_space<vmem>>, %arg3: memref<1x128xf32, #tpu.memory_space<vmem>>, %arg4: memref<2x128x128xf32, #tpu.memory_space<vmem>>, %arg5: memref<2x1x128xf32, #tpu.memory_space<vmem>>, %arg6: memref<128x128xf32, #tpu.memory_space<vmem>>, %arg7: memref<1x128xf32, #tpu.memory_space<vmem>>, %arg8: memref<8x128xf32, #tpu.memory_space<vmem>>) attributes {dimension_semantics = [#tpu.dimension_semantics<parallel>], iteration_bounds = array<i64: 1>, scalar_prefetch = 0 : i64, scratch_operands = 0 : i64, tpu.core_type = #tpu.core_type<tc>, window_params = [{transform_indices = @transform_0, window_bounds = array<i64: 8, 128>}, {pipeline_mode = #tpu.pipeline_mode<synchronous>, transform_indices = @transform_1, window_bounds = array<i64: 128, 128>}, {pipeline_mode = #tpu.pipeline_mode<synchronous>, transform_indices = @transform_2, window_bounds = array<i64: 1, 128>}, {pipeline_mode = #tpu.pipeline_mode<synchronous>, transform_indices = @transform_3, window_bounds = array<i64: 2, 128, 128>}, {pipeline_mode = #tpu.pipeline_mode<synchronous>, transform_indices = @transform_4, window_bounds = array<i64: 2, 1, 128>}, {pipeline_mode = #tpu.pipeline_mode<synchronous>, transform_indices = @transform_5, window_bounds = array<i64: 128, 128>}, {pipeline_mode = #tpu.pipeline_mode<synchronous>, transform_indices = @transform_6, window_bounds = array<i64: 1, 128>}, {transform_indices = @transform_7, window_bounds = array<i64: 8, 128>}]} {
    %c0 = arith.constant 0 : index
    %c0_0 = arith.constant 0 : index
    %0 = vector.load %arg1[%c0, %c0_0] : memref<8x128xf32, #tpu.memory_space<vmem>>, vector<8x128xf32>
    %c0_1 = arith.constant 0 : index
    %c0_2 = arith.constant 0 : index
    %1 = vector.load %arg2[%c0_1, %c0_2] : memref<128x128xf32, #tpu.memory_space<vmem>>, vector<128x128xf32>
    %cst = arith.constant dense<0.000000e+00> : vector<8x128xf32>
    %2 = tpu.matmul %0, %1, %cst {dimension_numbers = #tpu.dot_dimension_numbers<[1], [0], [0], [1], [0, 0, 1, 1], [], []>} : vector<8x128xf32>, vector<128x128xf32>, vector<8x128xf32> -> vector<8x128xf32>
    %c0_3 = arith.constant 0 : index
    %c0_4 = arith.constant 0 : index
    %3 = vector.load %arg3[%c0_3, %c0_4] : memref<1x128xf32, #tpu.memory_space<vmem>>, vector<1x128xf32>
    %4 = vector.broadcast %3 : vector<1x128xf32> to vector<8x128xf32>
    %5 = arith.addf %2, %4 : vector<8x128xf32>
    %c0_5 = arith.constant 0 : index
    %c0_6 = arith.constant 0 : index
    %c0_7 = arith.constant 0 : index
    %6 = vector.load %arg4[%c0_5, %c0_6, %c0_7] : memref<2x128x128xf32, #tpu.memory_space<vmem>>, vector<1x128x128xf32>
    %7 = vector.shape_cast %6 : vector<1x128x128xf32> to vector<128x128xf32>
    %cst_8 = arith.constant dense<0.000000e+00> : vector<8x128xf32>
    %8 = tpu.matmul %5, %7, %cst_8 {dimension_numbers = #tpu.dot_dimension_numbers<[1], [0], [0], [1], [0, 0, 1, 1], [], []>} : vector<8x128xf32>, vector<128x128xf32>, vector<8x128xf32> -> vector<8x128xf32>
    %c0_9 = arith.constant 0 : index
    %c0_10 = arith.constant 0 : index
    %c0_11 = arith.constant 0 : index
    %9 = vector.load %arg5[%c0_9, %c0_10, %c0_11] : memref<2x1x128xf32, #tpu.memory_space<vmem>>, vector<1x1x128xf32>
    %10 = vector.shape_cast %9 : vector<1x1x128xf32> to vector<1x128xf32>
    %11 = vector.broadcast %10 : vector<1x128xf32> to vector<8x128xf32>
    %12 = arith.addf %8, %11 : vector<8x128xf32>
    %13 = arith.addf %12, %5 : vector<8x128xf32>
    %cst_12 = arith.constant 0.000000e+00 : f32
    %14 = vector.broadcast %cst_12 : f32 to vector<8x128xf32>
    %15 = arith.maximumf %13, %14 : vector<8x128xf32>
    %c1 = arith.constant 1 : index
    %c0_13 = arith.constant 0 : index
    %c0_14 = arith.constant 0 : index
    %16 = vector.load %arg4[%c1, %c0_13, %c0_14] : memref<2x128x128xf32, #tpu.memory_space<vmem>>, vector<1x128x128xf32>
    %17 = vector.shape_cast %16 : vector<1x128x128xf32> to vector<128x128xf32>
    %cst_15 = arith.constant dense<0.000000e+00> : vector<8x128xf32>
    %18 = tpu.matmul %15, %17, %cst_15 {dimension_numbers = #tpu.dot_dimension_numbers<[1], [0], [0], [1], [0, 0, 1, 1], [], []>} : vector<8x128xf32>, vector<128x128xf32>, vector<8x128xf32> -> vector<8x128xf32>
    %c1_16 = arith.constant 1 : index
    %c0_17 = arith.constant 0 : index
    %c0_18 = arith.constant 0 : index
    %19 = vector.load %arg5[%c1_16, %c0_17, %c0_18] : memref<2x1x128xf32, #tpu.memory_space<vmem>>, vector<1x1x128xf32>
    %20 = vector.shape_cast %19 : vector<1x1x128xf32> to vector<1x128xf32>
    %21 = vector.broadcast %20 : vector<1x128xf32> to vector<8x128xf32>
    %22 = arith.addf %18, %21 : vector<8x128xf32>
    %23 = arith.addf %22, %15 : vector<8x128xf32>
    %cst_19 = arith.constant 0.000000e+00 : f32
    %24 = vector.broadcast %cst_19 : f32 to vector<8x128xf32>
    %25 = arith.maximumf %23, %24 : vector<8x128xf32>
    %c0_20 = arith.constant 0 : index
    %c0_21 = arith.constant 0 : index
    %26 = vector.load %arg6[%c0_20, %c0_21] : memref<128x128xf32, #tpu.memory_space<vmem>>, vector<128x128xf32>
    %cst_22 = arith.constant dense<0.000000e+00> : vector<8x128xf32>
    %27 = tpu.matmul %25, %26, %cst_22 {dimension_numbers = #tpu.dot_dimension_numbers<[1], [0], [0], [1], [0, 0, 1, 1], [], []>} : vector<8x128xf32>, vector<128x128xf32>, vector<8x128xf32> -> vector<8x128xf32>
    %c0_23 = arith.constant 0 : index
    %c0_24 = arith.constant 0 : index
    %28 = vector.load %arg7[%c0_23, %c0_24] : memref<1x128xf32, #tpu.memory_space<vmem>>, vector<1x128xf32>
    %29 = vector.broadcast %28 : vector<1x128xf32> to vector<8x128xf32>
    %30 = arith.addf %27, %29 : vector<8x128xf32>
    %c0_25 = arith.constant 0 : index
    %c0_26 = arith.constant 0 : index
    %31 = vector.load %arg8[%c0_25, %c0_26] : memref<8x128xf32, #tpu.memory_space<vmem>>, vector<8x128xf32>
    tpu.vector_store %arg8[%c0_25, %c0_26], %30 {strides = array<i32>} : memref<8x128xf32, #tpu.memory_space<vmem>>, vector<8x128xf32>,
    return
  }
  func.func @transform_0(%arg0: i32) -> (i32, i32) {
    %c0_i32 = arith.constant 0 : i32
    %c0_i32_0 = arith.constant 0 : i32
    return %arg0, %c0_i32 : i32, i32
  }
  func.func @transform_1(%arg0: i32) -> (i32, i32) {
    %c0_i32 = arith.constant 0 : i32
    %c0_i32_0 = arith.constant 0 : i32
    %c0_i32_1 = arith.constant 0 : i32
    return %c0_i32, %c0_i32_0 : i32, i32
  }
  func.func @transform_2(%arg0: i32) -> (i32, i32) {
    %c0_i32 = arith.constant 0 : i32
    %c0_i32_0 = arith.constant 0 : i32
    %c0_i32_1 = arith.constant 0 : i32
    return %c0_i32, %c0_i32_0 : i32, i32
  }
  func.func @transform_3(%arg0: i32) -> (i32, i32, i32) {
    %c0_i32 = arith.constant 0 : i32
    %c0_i32_0 = arith.constant 0 : i32
    %c0_i32_1 = arith.constant 0 : i32
    %c0_i32_2 = arith.constant 0 : i32
    return %c0_i32, %c0_i32_0, %c0_i32_1 : i32, i32, i32
  }
  func.func @transform_4(%arg0: i32) -> (i32, i32, i32) {
    %c0_i32 = arith.constant 0 : i32
    %c0_i32_0 = arith.constant 0 : i32
    %c0_i32_1 = arith.constant 0 : i32
    %c0_i32_2 = arith.constant 0 : i32
    return %c0_i32, %c0_i32_0, %c0_i32_1 : i32, i32, i32
  }
  func.func @transform_5(%arg0: i32) -> (i32, i32) {
    %c0_i32 = arith.constant 0 : i32
    %c0_i32_0 = arith.constant 0 : i32
    %c0_i32_1 = arith.constant 0 : i32
    return %c0_i32, %c0_i32_0 : i32, i32
  }
  func.func @transform_6(%arg0: i32) -> (i32, i32) {
    %c0_i32 = arith.constant 0 : i32
    %c0_i32_0 = arith.constant 0 : i32
    %c0_i32_1 = arith.constant 0 : i32
    return %c0_i32, %c0_i32_0 : i32, i32
  }
  func.func @transform_7(%arg0: i32) -> (i32, i32) {
    %c0_i32 = arith.constant 0 : i32
    %c0_i32_0 = arith.constant 0 : i32
    return %arg0, %c0_i32 : i32, i32
  }
}

</mosaic_0001>

<llo_original>
// kernel: forward.1
$region0: #{forward.1}
  #allocation0 [shape = 'u32[]', space=smem, size = 0x4, offset = 0x4, fixed_abs, tag = 'smem constant byte address 0x4 - core index']
  #allocation1 [shape = 'u32[144,128]{1,0:T(1,128)}', space=vmem, size = 0x12000, scoped, tag = 'internal scratch']
  %s0 = inlined_call_operand.vmem [shape: f32[8,128], index: 0, kind: input, shape index: {}]
  %s1 = inlined_call_operand.hbm [shape: f32[128,128], index: 1, kind: input, shape index: {}]
  %s2 = inlined_call_operand.vmem [shape: f32[1,128], index: 2, kind: input, shape index: {}]
  %s3 = inlined_call_operand.hbm [shape: f32[2,128,128], index: 3, kind: input, shape index: {}]
  %s4 = inlined_call_operand.vmem [shape: f32[2,1,128], index: 4, kind: input, shape index: {}]
  %s5 = inlined_call_operand.hbm [shape: f32[128,128], index: 5, kind: input, shape index: {}]
  %s6 = inlined_call_operand.vmem [shape: f32[1,128], index: 6, kind: input, shape index: {}]
  %s7 = inlined_call_operand.vmem [shape: f32[8,128], index: 7, kind: output, shape index: {}]
  %s8 = sld [smem:[#allocation0]]
  $region50: #{forward.1} parent=0
    _
  %s10 = ssub.s32 1, %s8
  %s11 = scalar_select 0, %s10, %s8
  $region1: #{forward.1} parent=0
    #allocation2 [shape = 'u8[65536]{0}', space=vmem, size = 0x10000, scoped, tag = 'input window, operand 1, single buffered']
    #allocation3 [shape = 's32[1]{0}', space=sflag, size = 0x4, scoped, tag = 'scoped memory for forward.1']
    #allocation4 [shape = 'u8[131072]{0}', space=vmem, size = 0x20000, scoped, tag = 'input window, operand 3, single buffered']
    #allocation5 [shape = 's32[1]{0}', space=sflag, size = 0x4, scoped, tag = 'scoped memory for forward.1']
    #allocation6 [shape = 'u8[65536]{0}', space=vmem, size = 0x10000, scoped, tag = 'input window, operand 5, single buffered']
    %12 = vsyncpa [#allocation3], 0
    %13 = vsyncpa [#allocation5], 0
    // Predicated region
    $region2: #{forward.1} parent=1 // pred_check
      _
    $region3: #{forward.1} parent=1 // pred_check_branch
      %15 = sbr.rel (0) target = $region5
    $region4: #{forward.1} parent=1 // pred_region
      _
    $region5: #{forward.1} parent=1 // pred_fallthru
      _
    // Predicated region
    $region6: #{forward.1} parent=1 // pred_check
      _
    $region7: #{forward.1} parent=1 // pred_check_branch
      %17 = sbr.rel (0) target = $region9
    $region8: #{forward.1} parent=1 // pred_region
      %s19 = ssub.s32 2048, 2048
      %20 = vsyncadd [#allocation3], %s19
      %s21 = sshll.u32 [#allocation2], 4
      %s22 = int_to_ptr.vmem [resolvable:$true] %s21
      %27 = dma.hbm_to_vmem [thread:$0]  %s1, 2048, %s22, [#allocation3], 128, 128, 8
    $region9: #{forward.1} parent=1 // pred_fallthru
      _
    // Predicated region
    $region10: #{forward.1} parent=1 // pred_check
      _
    $region11: #{forward.1} parent=1 // pred_check_branch
      %29 = sbr.rel (0) target = $region13
    $region12: #{forward.1} parent=1 // pred_region
      _
    $region13: #{forward.1} parent=1 // pred_fallthru
      _
    // Predicated region
    $region14: #{forward.1} parent=1 // pred_check
      _
    $region15: #{forward.1} parent=1 // pred_check_branch
      %31 = sbr.rel (0) target = $region17
    $region16: #{forward.1} parent=1 // pred_region
      %s33 = ssub.s32 4096, 4096
      %34 = vsyncadd [#allocation5], %s33
      %s35 = sshll.u32 [#allocation4], 4
      %s36 = int_to_ptr.vmem [resolvable:$true] %s35
      %41 = dma.hbm_to_vmem [thread:$0]  %s3, 4096, %s36, [#allocation5], 128, 128, 8
    $region17: #{forward.1} parent=1 // pred_fallthru
      _
    // Predicated region
    $region18: #{forward.1} parent=1 // pred_check
      _
    $region19: #{forward.1} parent=1 // pred_check_branch
      %43 = sbr.rel (0) target = $region21
    $region20: #{forward.1} parent=1 // pred_region
      _
    $region21: #{forward.1} parent=1 // pred_fallthru
      _
    // Predicated region
    $region22: #{forward.1} parent=1 // pred_check
      _
    $region23: #{forward.1} parent=1 // pred_check_branch
      %45 = sbr.rel (0) target = $region25
    $region24: #{forward.1} parent=1 // pred_region
      %s47 = ssub.s32 2048, 2048
      %48 = vsyncadd [#allocation5], %s47
      %s49 = sshll.u32 [#allocation6], 4
      %s50 = int_to_ptr.vmem [resolvable:$true] %s49
      %55 = dma.hbm_to_vmem [thread:$0]  %s5, 2048, %s50, [#allocation5], 128, 128, 8
    $region25: #{forward.1} parent=1 // pred_fallthru
      _
    // Predicated region
    $region26: #{forward.1} parent=1 // pred_check
      _
    $region27: #{forward.1} parent=1 // pred_check_branch
      %57 = sbr.rel (0) target = $region29
    $region28: #{forward.1} parent=1 // pred_region
      _
    $region29: #{forward.1} parent=1 // pred_fallthru
      _
    // Predicated region
    $region30: #{forward.1} parent=1 // pred_check
      _
    $region31: #{forward.1} parent=1 // pred_check_branch
      %59 = sbr.rel (0) target = $region33
    $region32: #{forward.1} parent=1 // pred_region
      %60 = dma.done [#allocation3], 2048
    $region33: #{forward.1} parent=1 // pred_fallthru
      _
    // Predicated region
    $region34: #{forward.1} parent=1 // pred_check
      _
    $region35: #{forward.1} parent=1 // pred_check_branch
      %62 = sbr.rel (0) target = $region37
    $region36: #{forward.1} parent=1 // pred_region
      %63 = dma.done [#allocation5], 4096
    $region37: #{forward.1} parent=1 // pred_fallthru
      _
    // Predicated region
    $region38: #{forward.1} parent=1 // pred_check
      _
    $region39: #{forward.1} parent=1 // pred_check_branch
      %65 = sbr.rel (0) target = $region41
    $region40: #{forward.1} parent=1 // pred_region
      %66 = dma.done [#allocation5], 2048
    $region41: #{forward.1} parent=1 // pred_fallthru
      _
    %v67 = vld [vmem:[%s0] sm:$0xff]
    %v68 = vld [vmem:[#allocation2] sm:$0xff]
    %v69 = vld [vmem:[#allocation2 + $0x8] sm:$0xff]
    %v70 = vld [vmem:[#allocation2 + $0x10] sm:$0xff]
    %v71 = vld [vmem:[#allocation2 + $0x18] sm:$0xff]
    %v72 = vld [vmem:[#allocation2 + $0x20] sm:$0xff]
    %v73 = vld [vmem:[#allocation2 + $0x28] sm:$0xff]
    %v74 = vld [vmem:[#allocation2 + $0x30] sm:$0xff]
    %v75 = vld [vmem:[#allocation2 + $0x38] sm:$0xff]
    %v76 = vld [vmem:[#allocation2 + $0x40] sm:$0xff]
    %v77 = vld [vmem:[#allocation2 + $0x48] sm:$0xff]
    %v78 = vld [vmem:[#allocation2 + $0x50] sm:$0xff]
    %v79 = vld [vmem:[#allocation2 + $0x58] sm:$0xff]
    %v80 = vld [vmem:[#allocation2 + $0x60] sm:$0xff]
    %v81 = vld [vmem:[#allocation2 + $0x68] sm:$0xff]
    %v82 = vld [vmem:[#allocation2 + $0x70] sm:$0xff]
    %v83 = vld [vmem:[#allocation2 + $0x78] sm:$0xff]
    %v84 = vld [vmem:[%s2] sm:$0x1]
    %v86 = vlaneseq
    %v87 = vshrl.u32 %v86, 7
    %v88 = vsub.s32 0, %v87
    %v89 = vrot.slane %v84, %v88
    %91 = vmatprep.subr.mxu0 0.0
    %92 = vmatpush1.msra.mxu0 %v68
    %93 = vmatprep.subr.mxu0 0.0
    %94 = vmatpush1.msra.mxu0 %v69
    %95 = vmatprep.subr.mxu0 0.0
    %96 = vmatpush1.msra.mxu0 %v70
    %97 = vmatprep.subr.mxu0 0.0
    %98 = vmatpush1.msra.mxu0 %v71
    %99 = vmatprep.subr.mxu0 0.0
    %100 = vmatpush1.msra.mxu0 %v72
    %101 = vmatprep.subr.mxu0 0.0
    %102 = vmatpush1.msra.mxu0 %v73
    %103 = vmatprep.subr.mxu0 0.0
    %104 = vmatpush1.msra.mxu0 %v74
    %105 = vmatprep.subr.mxu0 0.0
    %106 = vmatpush1.msra.mxu0 %v75
    %107 = vmatprep.subr.mxu0 0.0
    %108 = vmatpush1.msra.mxu0 %v76
    %109 = vmatprep.subr.mxu0 0.0
    %110 = vmatpush1.msra.mxu0 %v77
    %111 = vmatprep.subr.mxu0 0.0
    %112 = vmatpush1.msra.mxu0 %v78
    %113 = vmatprep.subr.mxu0 0.0
    %114 = vmatpush1.msra.mxu0 %v79
    %115 = vmatprep.subr.mxu0 0.0
    %116 = vmatpush1.msra.mxu0 %v80
    %117 = vmatprep.subr.mxu0 0.0
    %118 = vmatpush1.msra.mxu0 %v81
    %119 = vmatprep.subr.mxu0 0.0
    %120 = vmatpush1.msra.mxu0 %v82
    %121 = vmatprep.subr.mxu0 0.0
    %122 = vmatpush1.msra.mxu0 %v83
    %123 = vmatprep.subr.mxu0 0.0
    %124 = vmatpush1.msra.mxu0 0.0
    %125 = vmatprep.subr.mxu0 0.0
    %126 = vmatpush1.msra.mxu0 0.0
    %127 = vmatprep.subr.mxu0 0.0
    %128 = vmatpush1.msra.mxu0 0.0
    %129 = vmatprep.subr.mxu0 0.0
    %130 = vmatpush1.msra.mxu0 0.0
    %131 = vmatprep.subr.mxu0 0.0
    %132 = vmatpush1.msra.mxu0 0.0
    %133 = vmatprep.subr.mxu0 0.0
    %134 = vmatpush1.msra.mxu0 0.0
    %135 = vmatprep.subr.mxu0 0.0
    %136 = vmatpush1.msra.mxu0 0.0
    %137 = vmatprep.subr.mxu0 0.0
    %138 = vmatpush1.msra.mxu0 0.0
    %139 = vmatprep.subr.mxu0 0.0
    %140 = vmatpush1.msra.mxu0 0.0
    %141 = vmatprep.subr.mxu0 0.0
    %142 = vmatpush1.msra.mxu0 0.0
    %143 = vmatprep.subr.mxu0 0.0
    %144 = vmatpush1.msra.mxu0 0.0
    %145 = vmatprep.subr.mxu0 0.0
    %146 = vmatpush1.msra.mxu0 0.0
    %147 = vmatprep.subr.mxu0 0.0
    %148 = vmatpush1.msra.mxu0 0.0
    %149 = vmatprep.subr.mxu0 0.0
    %150 = vmatpush1.msra.mxu0 0.0
    %151 = vmatprep.subr.mxu0 0.0
    %152 = vmatpush1.msra.mxu0 0.0
    %153 = vmatprep.subr.mxu0 0.0
    %154 = vmatpush1.msra.mxu0 0.0
    %155 = vmatprep.mubr.f32.mxu0 0.0
    %156 = vmatmul.mubr.f32.gmra.mrb[0].mxu0 %v67
    %v157 = vpop.f32.mrb[0].mxu0
    %v158 = vadd.f32 %v89, %v157
    %v159 = vpop.f32.mrb[0].mxu0
    %160 = vdwg.mxu0
    %v161 = vld [vmem:[#allocation4] sm:$0xff]
    %v162 = vld [vmem:[#allocation4 + $0x8] sm:$0xff]
    %v163 = vld [vmem:[#allocation4 + $0x10] sm:$0xff]
    %v164 = vld [vmem:[#allocation4 + $0x18] sm:$0xff]
    %v165 = vld [vmem:[#allocation4 + $0x20] sm:$0xff]
    %v166 = vld [vmem:[#allocation4 + $0x28] sm:$0xff]
    %v167 = vld [vmem:[#allocation4 + $0x30] sm:$0xff]
    %v168 = vld [vmem:[#allocation4 + $0x38] sm:$0xff]
    %v169 = vld [vmem:[#allocation4 + $0x40] sm:$0xff]
    %v170 = vld [vmem:[#allocation4 + $0x48] sm:$0xff]
    %v171 = vld [vmem:[#allocation4 + $0x50] sm:$0xff]
    %v172 = vld [vmem:[#allocation4 + $0x58] sm:$0xff]
    %v173 = vld [vmem:[#allocation4 + $0x60] sm:$0xff]
    %v174 = vld [vmem:[#allocation4 + $0x68] sm:$0xff]
    %v175 = vld [vmem:[#allocation4 + $0x70] sm:$0xff]
    %v176 = vld [vmem:[#allocation4 + $0x78] sm:$0xff]
    %v177 = vld [vmem:[%s4] sm:$0x1]
    %v179 = vlaneseq
    %v180 = vshrl.u32 %v179, 7
    %v181 = vsub.s32 0, %v180
    %v182 = vrot.slane %v177, %v181
    %184 = vmatprep.subr.mxu0 0.0
    %185 = vmatpush1.msra.mxu0 %v161
    %186 = vmatprep.subr.mxu0 0.0
    %187 = vmatpush1.msra.mxu0 %v162
    %188 = vmatprep.subr.mxu0 0.0
    %189 = vmatpush1.msra.mxu0 %v163
    %190 = vmatprep.subr.mxu0 0.0
    %191 = vmatpush1.msra.mxu0 %v164
    %192 = vmatprep.subr.mxu0 0.0
    %193 = vmatpush1.msra.mxu0 %v165
    %194 = vmatprep.subr.mxu0 0.0
    %195 = vmatpush1.msra.mxu0 %v166
    %196 = vmatprep.subr.mxu0 0.0
    %197 = vmatpush1.msra.mxu0 %v167
    %198 = vmatprep.subr.mxu0 0.0
    %199 = vmatpush1.msra.mxu0 %v168
    %200 = vmatprep.subr.mxu0 0.0
    %201 = vmatpush1.msra.mxu0 %v169
    %202 = vmatprep.subr.mxu0 0.0
    %203 = vmatpush1.msra.mxu0 %v170
    %204 = vmatprep.subr.mxu0 0.0
    %205 = vmatpush1.msra.mxu0 %v171
    %206 = vmatprep.subr.mxu0 0.0
    %207 = vmatpush1.msra.mxu0 %v172
    %208 = vmatprep.subr.mxu0 0.0
    %209 = vmatpush1.msra.mxu0 %v173
    %210 = vmatprep.subr.mxu0 0.0
    %211 = vmatpush1.msra.mxu0 %v174
    %212 = vmatprep.subr.mxu0 0.0
    %213 = vmatpush1.msra.mxu0 %v175
    %214 = vmatprep.subr.mxu0 0.0
    %215 = vmatpush1.msra.mxu0 %v176
    %216 = vmatprep.subr.mxu0 0.0
    %217 = vmatpush1.msra.mxu0 0.0
    %218 = vmatprep.subr.mxu0 0.0
    %219 = vmatpush1.msra.mxu0 0.0
    %220 = vmatprep.subr.mxu0 0.0
    %221 = vmatpush1.msra.mxu0 0.0
    %222 = vmatprep.subr.mxu0 0.0
    %223 = vmatpush1.msra.mxu0 0.0
    %224 = vmatprep.subr.mxu0 0.0
    %225 = vmatpush1.msra.mxu0 0.0
    %226 = vmatprep.subr.mxu0 0.0
    %227 = vmatpush1.msra.mxu0 0.0
    %228 = vmatprep.subr.mxu0 0.0
    %229 = vmatpush1.msra.mxu0 0.0
    %230 = vmatprep.subr.mxu0 0.0
    %231 = vmatpush1.msra.mxu0 0.0
    %232 = vmatprep.subr.mxu0 0.0
    %233 = vmatpush1.msra.mxu0 0.0
    %234 = vmatprep.subr.mxu0 0.0
    %235 = vmatpush1.msra.mxu0 0.0
    %236 = vmatprep.subr.mxu0 0.0
    %237 = vmatpush1.msra.mxu0 0.0
    %238 = vmatprep.subr.mxu0 0.0
    %239 = vmatpush1.msra.mxu0 0.0
    %240 = vmatprep.subr.mxu0 0.0
    %241 = vmatpush1.msra.mxu0 0.0
    %242 = vmatprep.subr.mxu0 0.0
    %243 = vmatpush1.msra.mxu0 0.0
    %244 = vmatprep.subr.mxu0 0.0
    %245 = vmatpush1.msra.mxu0 0.0
    %246 = vmatprep.subr.mxu0 0.0
    %247 = vmatpush1.msra.mxu0 0.0
    %248 = vmatprep.mubr.f32.mxu0 0.0
    %249 = vmatmul.mubr.f32.gmra.mrb[0].mxu0 %v158
    %v250 = vpop.f32.mrb[0].mxu0
    %v251 = vadd.f32 %v182, %v250
    %v252 = vpop.f32.mrb[0].mxu0
    %253 = vdwg.mxu0
    %v254 = vadd.f32 %v251, %v158
    %v255 = vmax.f32 %v254, 0.0
    %s256 = scalar_lea.vmem [#allocation4], 128
    %v257 = vld [vmem:[%s256] sm:$0xff]
    %v258 = vld [vmem:[%s256 + $0x8] sm:$0xff]
    %v259 = vld [vmem:[%s256 + $0x10] sm:$0xff]
    %v260 = vld [vmem:[%s256 + $0x18] sm:$0xff]
    %v261 = vld [vmem:[%s256 + $0x20] sm:$0xff]
    %v262 = vld [vmem:[%s256 + $0x28] sm:$0xff]
    %v263 = vld [vmem:[%s256 + $0x30] sm:$0xff]
    %v264 = vld [vmem:[%s256 + $0x38] sm:$0xff]
    %v265 = vld [vmem:[%s256 + $0x40] sm:$0xff]
    %v266 = vld [vmem:[%s256 + $0x48] sm:$0xff]
    %v267 = vld [vmem:[%s256 + $0x50] sm:$0xff]
    %v268 = vld [vmem:[%s256 + $0x58] sm:$0xff]
    %v269 = vld [vmem:[%s256 + $0x60] sm:$0xff]
    %v270 = vld [vmem:[%s256 + $0x68] sm:$0xff]
    %v271 = vld [vmem:[%s256 + $0x70] sm:$0xff]
    %v272 = vld [vmem:[%s256 + $0x78] sm:$0xff]
    %s273 = scalar_lea.vmem %s4, 1
    %v274 = vld [vmem:[%s273] sm:$0x1]
    %v276 = vlaneseq
    %v277 = vshrl.u32 %v276, 7
    %v278 = vsub.s32 0, %v277
    %v279 = vrot.slane %v274, %v278
    %281 = vmatprep.subr.mxu0 0.0
    %282 = vmatpush1.msra.mxu0 %v257
    %283 = vmatprep.subr.mxu0 0.0
    %284 = vmatpush1.msra.mxu0 %v258
    %285 = vmatprep.subr.mxu0 0.0
    %286 = vmatpush1.msra.mxu0 %v259
    %287 = vmatprep.subr.mxu0 0.0
    %288 = vmatpush1.msra.mxu0 %v260
    %289 = vmatprep.subr.mxu0 0.0
    %290 = vmatpush1.msra.mxu0 %v261
    %291 = vmatprep.subr.mxu0 0.0
    %292 = vmatpush1.msra.mxu0 %v262
    %293 = vmatprep.subr.mxu0 0.0
    %294 = vmatpush1.msra.mxu0 %v263
    %295 = vmatprep.subr.mxu0 0.0
    %296 = vmatpush1.msra.mxu0 %v264
    %297 = vmatprep.subr.mxu0 0.0
    %298 = vmatpush1.msra.mxu0 %v265
    %299 = vmatprep.subr.mxu0 0.0
    %300 = vmatpush1.msra.mxu0 %v266
    %301 = vmatprep.subr.mxu0 0.0
    %302 = vmatpush1.msra.mxu0 %v267
    %303 = vmatprep.subr.mxu0 0.0
    %304 = vmatpush1.msra.mxu0 %v268
    %305 = vmatprep.subr.mxu0 0.0
    %306 = vmatpush1.msra.mxu0 %v269
    %307 = vmatprep.subr.mxu0 0.0
    %308 = vmatpush1.msra.mxu0 %v270
    %309 = vmatprep.subr.mxu0 0.0
    %310 = vmatpush1.msra.mxu0 %v271
    %311 = vmatprep.subr.mxu0 0.0
    %312 = vmatpush1.msra.mxu0 %v272
    %313 = vmatprep.subr.mxu0 0.0
    %314 = vmatpush1.msra.mxu0 0.0
    %315 = vmatprep.subr.mxu0 0.0
    %316 = vmatpush1.msra.mxu0 0.0
    %317 = vmatprep.subr.mxu0 0.0
    %318 = vmatpush1.msra.mxu0 0.0
    %319 = vmatprep.subr.mxu0 0.0
    %320 = vmatpush1.msra.mxu0 0.0
    %321 = vmatprep.subr.mxu0 0.0
    %322 = vmatpush1.msra.mxu0 0.0
    %323 = vmatprep.subr.mxu0 0.0
    %324 = vmatpush1.msra.mxu0 0.0
    %325 = vmatprep.subr.mxu0 0.0
    %326 = vmatpush1.msra.mxu0 0.0
    %327 = vmatprep.subr.mxu0 0.0
    %328 = vmatpush1.msra.mxu0 0.0
    %329 = vmatprep.subr.mxu0 0.0
    %330 = vmatpush1.msra.mxu0 0.0
    %331 = vmatprep.subr.mxu0 0.0
    %332 = vmatpush1.msra.mxu0 0.0
    %333 = vmatprep.subr.mxu0 0.0
    %334 = vmatpush1.msra.mxu0 0.0
    %335 = vmatprep.subr.mxu0 0.0
    %336 = vmatpush1.msra.mxu0 0.0
    %337 = vmatprep.subr.mxu0 0.0
    %338 = vmatpush1.msra.mxu0 0.0
    %339 = vmatprep.subr.mxu0 0.0
    %340 = vmatpush1.msra.mxu0 0.0
    %341 = vmatprep.subr.mxu0 0.0
    %342 = vmatpush1.msra.mxu0 0.0
    %343 = vmatprep.subr.mxu0 0.0
    %344 = vmatpush1.msra.mxu0 0.0
    %345 = vmatprep.mubr.f32.mxu0 0.0
    %346 = vmatmul.mubr.f32.gmra.mrb[0].mxu0 %v255
    %v347 = vpop.f32.mrb[0].mxu0
    %v348 = vadd.f32 %v279, %v347
    %v349 = vpop.f32.mrb[0].mxu0
    %350 = vdwg.mxu0
    %v351 = vadd.f32 %v348, %v255
    %v352 = vmax.f32 %v351, 0.0
    %v353 = vld [vmem:[#allocation6] sm:$0xff]
    %v354 = vld [vmem:[#allocation6 + $0x8] sm:$0xff]
    %v355 = vld [vmem:[#allocation6 + $0x10] sm:$0xff]
    %v356 = vld [vmem:[#allocation6 + $0x18] sm:$0xff]
    %v357 = vld [vmem:[#allocation6 + $0x20] sm:$0xff]
    %v358 = vld [vmem:[#allocation6 + $0x28] sm:$0xff]
    %v359 = vld [vmem:[#allocation6 + $0x30] sm:$0xff]
    %v360 = vld [vmem:[#allocation6 + $0x38] sm:$0xff]
    %v361 = vld [vmem:[#allocation6 + $0x40] sm:$0xff]
    %v362 = vld [vmem:[#allocation6 + $0x48] sm:$0xff]
    %v363 = vld [vmem:[#allocation6 + $0x50] sm:$0xff]
    %v364 = vld [vmem:[#allocation6 + $0x58] sm:$0xff]
    %v365 = vld [vmem:[#allocation6 + $0x60] sm:$0xff]
    %v366 = vld [vmem:[#allocation6 + $0x68] sm:$0xff]
    %v367 = vld [vmem:[#allocation6 + $0x70] sm:$0xff]
    %v368 = vld [vmem:[#allocation6 + $0x78] sm:$0xff]
    %v369 = vld [vmem:[%s6] sm:$0x1]
    %v371 = vlaneseq
    %v372 = vshrl.u32 %v371, 7
    %v373 = vsub.s32 0, %v372
    %v374 = vrot.slane %v369, %v373
    %376 = vmatprep.subr.mxu0 0.0
    %377 = vmatpush1.msra.mxu0 %v353
    %378 = vmatprep.subr.mxu0 0.0
    %379 = vmatpush1.msra.mxu0 %v354
    %380 = vmatprep.subr.mxu0 0.0
    %381 = vmatpush1.msra.mxu0 %v355
    %382 = vmatprep.subr.mxu0 0.0
    %383 = vmatpush1.msra.mxu0 %v356
    %384 = vmatprep.subr.mxu0 0.0
    %385 = vmatpush1.msra.mxu0 %v357
    %386 = vmatprep.subr.mxu0 0.0
    %387 = vmatpush1.msra.mxu0 %v358
    %388 = vmatprep.subr.mxu0 0.0
    %389 = vmatpush1.msra.mxu0 %v359
    %390 = vmatprep.subr.mxu0 0.0
    %391 = vmatpush1.msra.mxu0 %v360
    %392 = vmatprep.subr.mxu0 0.0
    %393 = vmatpush1.msra.mxu0 %v361
    %394 = vmatprep.subr.mxu0 0.0
    %395 = vmatpush1.msra.mxu0 %v362
    %396 = vmatprep.subr.mxu0 0.0
    %397 = vmatpush1.msra.mxu0 %v363
    %398 = vmatprep.subr.mxu0 0.0
    %399 = vmatpush1.msra.mxu0 %v364
    %400 = vmatprep.subr.mxu0 0.0
    %401 = vmatpush1.msra.mxu0 %v365
    %402 = vmatprep.subr.mxu0 0.0
    %403 = vmatpush1.msra.mxu0 %v366
    %404 = vmatprep.subr.mxu0 0.0
    %405 = vmatpush1.msra.mxu0 %v367
    %406 = vmatprep.subr.mxu0 0.0
    %407 = vmatpush1.msra.mxu0 %v368
    %408 = vmatprep.subr.mxu0 0.0
    %409 = vmatpush1.msra.mxu0 0.0
    %410 = vmatprep.subr.mxu0 0.0
    %411 = vmatpush1.msra.mxu0 0.0
    %412 = vmatprep.subr.mxu0 0.0
    %413 = vmatpush1.msra.mxu0 0.0
    %414 = vmatprep.subr.mxu0 0.0
    %415 = vmatpush1.msra.mxu0 0.0
    %416 = vmatprep.subr.mxu0 0.0
    %417 = vmatpush1.msra.mxu0 0.0
    %418 = vmatprep.subr.mxu0 0.0
    %419 = vmatpush1.msra.mxu0 0.0
    %420 = vmatprep.subr.mxu0 0.0
    %421 = vmatpush1.msra.mxu0 0.0
    %422 = vmatprep.subr.mxu0 0.0
    %423 = vmatpush1.msra.mxu0 0.0
    %424 = vmatprep.subr.mxu0 0.0
    %425 = vmatpush1.msra.mxu0 0.0
    %426 = vmatprep.subr.mxu0 0.0
    %427 = vmatpush1.msra.mxu0 0.0
    %428 = vmatprep.subr.mxu0 0.0
    %429 = vmatpush1.msra.mxu0 0.0
    %430 = vmatprep.subr.mxu0 0.0
    %431 = vmatpush1.msra.mxu0 0.0
    %432 = vmatprep.subr.mxu0 0.0
    %433 = vmatpush1.msra.mxu0 0.0
    %434 = vmatprep.subr.mxu0 0.0
    %435 = vmatpush1.msra.mxu0 0.0
    %436 = vmatprep.subr.mxu0 0.0
    %437 = vmatpush1.msra.mxu0 0.0
    %438 = vmatprep.subr.mxu0 0.0
    %439 = vmatpush1.msra.mxu0 0.0
    %440 = vmatprep.mubr.f32.mxu0 0.0
    %441 = vmatmul.mubr.f32.gmra.mrb[0].mxu0 %v352
    %v442 = vpop.f32.mrb[0].mxu0
    %v443 = vadd.f32 %v374, %v442
    %v444 = vpop.f32.mrb[0].mxu0
    %445 = vdwg.mxu0
    %446 = vst [vmem:[%s7] sm:$0xff] %v443
    // Predicated region
    $region42: #{forward.1} parent=1 // pred_check
      _
    $region43: #{forward.1} parent=1 // pred_check_branch
      %448 = sbr.rel (0) target = $region45
    $region44: #{forward.1} parent=1 // pred_region
      _
    $region45: #{forward.1} parent=1 // pred_fallthru
      _
    // Predicated region
    $region46: #{forward.1} parent=1 // pred_check
      _
    $region47: #{forward.1} parent=1 // pred_check_branch
      %450 = sbr.rel (0) target = $region49
    $region48: #{forward.1} parent=1 // pred_region
      _
    $region49: #{forward.1} parent=1 // pred_fallthru
      _
    %451 = vsyncpa [#allocation3], 1
    %452 = vsyncpa [#allocation5], 1

</llo_original>
